<compile_context>
chip_gen: v7x
topology: tpu7x:2x2x1
jax: 0.10.0
libtpu: 0.0.40
codegen_flags: <defaults>
</compile_context>

<pallas_src>
import functools

import jax
import jax.numpy as jnp
from jax.experimental import pallas as pl
from jax.experimental.pallas import tpu as pltpu

LATENT_DIM = 32
L = 64          # conv sequence length (fc -> 4 * 64)
C_FC = 4        # channels after the fc reshape


def _round_up(x, m):
    return (x + m - 1) // m * m


def _cdiv(a, b):
    return (a + b - 1) // b


def _device_kind():
    try:
        return jax.devices()[0].device_kind.lower().replace(" ", "")
    except Exception:
        return ""


def _default_epilogue_dtype():
    """bf16 bias/ReLU epilogue only on bf16-capable VPUs (v6e / v7x)."""
    kind = _device_kind()
    if ("v6" in kind) or ("v7" in kind) or ("tpu7" in kind):
        return jnp.bfloat16
    return jnp.float32


def _has_two_tensorcores():
    kind = _device_kind()
    return ("v7" in kind) or ("tpu7" in kind)


# ---------------------------------------------------------------------------
# Pallas kernel: 3 MXU matmuls + bias + ReLU on one (tb, ...) batch tile.
# The epilogue dtype (f32 on v5e, bf16 on v6e/v7x) is carried by the bias
# arrays, so the kernel body is generation-agnostic.
# ---------------------------------------------------------------------------
def _decoder_kernel(z_ref, wc_ref, bc_ref, m2_ref, b2_ref, m3_ref, b3_ref,
                    out_ref):
    # Layer 1: folded fc + Conv1d(4->8): (tb, D) @ (D, 512), bias, ReLU.
    h = jnp.dot(z_ref[...].astype(wc_ref.dtype), wc_ref[...],
                preferred_element_type=jnp.float32)
    h = jnp.maximum(h.astype(bc_ref.dtype) + bc_ref[...], 0)
    # Layer 2: Conv1d(8->4) as banded matmul: (tb, 512) @ (512, 256).
    h = jnp.dot(h.astype(m2_ref.dtype), m2_ref[...],
                preferred_element_type=jnp.float32)
    h = jnp.maximum(h.astype(b2_ref.dtype) + b2_ref[...], 0)
    # Layer 3: Conv1d(4->1) as banded matmul: (tb, 256) @ (256, 64), no act.
    h = jnp.dot(h.astype(m3_ref.dtype), m3_ref[...],
                preferred_element_type=jnp.float32)
    out_ref[...] = (h.astype(b3_ref.dtype) + b3_ref[...]).astype(out_ref.dtype)


# ---------------------------------------------------------------------------
# One-time weight preparation (hoisted out of the per-call path).
# ---------------------------------------------------------------------------
def _conv1d_as_matmul(w):
    """PyTorch Conv1d weight (Co, Ci, 3), padding=1, stride=1 -> (Ci*L, Co*L)
    matrix M with out_flat = x_flat @ M, where x_flat[n, i*L + m]."""
    co, ci, K = w.shape
    mat = jnp.zeros((ci, L, co, L), dtype=w.dtype)
    for k in range(K):
        # A_k[m, l] = 1 iff m == l + k - 1  (zero padding handled implicitly)
        a_k = jnp.eye(L, L, 1 - k, dtype=w.dtype)
        mat = mat + jnp.einsum('oi,ml->imol', w[:, :, k], a_k)
    return mat.reshape(ci * L, co * L)


def prepare_weights(p, weight_dtype=jnp.bfloat16, epilogue_dtype=None):
    """Fold fc+conv1, lower convs to banded matrices, cast. Call once, reuse.
    Biases carry the epilogue (bias+ReLU) dtype; f32 weights force an exact
    f32 epilogue."""
    if epilogue_dtype is None:
        epilogue_dtype = (_default_epilogue_dtype()
                          if weight_dtype == jnp.bfloat16 else jnp.float32)

    wfc = p['fc_w'].T                              # (D, 256)
    bfc = p['fc_b'][None, :]                       # (1, 256)
    m1 = _conv1d_as_matmul(p['w1'])                # (256, 512)
    b1 = jnp.repeat(p['b1'], L)[None, :]           # (1, 512)

    # Exact fold: fc followed immediately by conv1 (no activation in between).
    w_comb = wfc @ m1                              # (D, 512)
    b_comb = bfc @ m1 + b1                         # (1, 512)

    m2 = _conv1d_as_matmul(p['w2'])                # (512, 256)
    b2 = jnp.repeat(p['b2'], L)[None, :]           # (1, 256)
    m3 = _conv1d_as_matmul(p['w3'])                # (256, 64)
    b3 = jnp.repeat(p['b3'], L)[None, :]           # (1, 64)

    return {
        'wc': w_comb.astype(weight_dtype), 'bc': b_comb.astype(epilogue_dtype),
        'm2': m2.astype(weight_dtype),     'b2': b2.astype(epilogue_dtype),
        'm3': m3.astype(weight_dtype),     'b3': b3.astype(epilogue_dtype),
    }


def init_params(key, latent_dim=LATENT_DIM):
    ks = jax.random.split(key, 8)

    def unif(k, shape, fan_in):
        bound = 1.0 / jnp.sqrt(jnp.float32(fan_in))
        return jax.random.uniform(k, shape, jnp.float32, -bound, bound)

    return {
        'fc_w': unif(ks[0], (C_FC * L, latent_dim), latent_dim),  # (out, in)
        'fc_b': unif(ks[1], (C_FC * L,), latent_dim),
        'w1': unif(ks[2], (8, 4, 3), 4 * 3),
        'b1': unif(ks[3], (8,), 4 * 3),
        'w2': unif(ks[4], (4, 8, 3), 8 * 3),
        'b2': unif(ks[5], (4,), 8 * 3),
        'w3': unif(ks[6], (1, 4, 3), 4 * 3),
        'b3': unif(ks[7], (1,), 4 * 3),
    }


# ---------------------------------------------------------------------------
# Wrapper: batch-tiled pallas_call, tile size derived from the batch.
# ---------------------------------------------------------------------------
def decoder_conv_forward(z, w, tb_max=1024, out_dtype=jnp.bfloat16,
                         ensure_multi_step=None):
    """z: (B, latent_dim), w: prepare_weights(...) output -> (B, 64)."""
    b_sz, d = z.shape
    if ensure_multi_step is None:
        ensure_multi_step = _has_two_tensorcores()

    # Pad the batch only to a multiple of 8 and derive the tile from B, so
    # padding waste is bounded (< 8 rows per grid step) while tiles stay big.
    b8 = _round_up(max(b_sz, 8), 8)
    n_steps = _cdiv(b8, tb_max)
    if ensure_multi_step and b8 >= 512:
        n_steps = max(n_steps, 2)         # keep both v7x TensorCores busy
    tb = _round_up(_cdiv(b8, n_steps), 8)
    b_pad = n_steps * tb

    z_p = z if b_pad == b_sz else jnp.pad(z, ((0, b_pad - b_sz), (0, 0)))

    n1 = w['wc'].shape[1]                   # 512
    n2 = w['m2'].shape[1]                   # 256
    flops = 2 * b_pad * (d * n1 + n1 * n2 + n2 * L)
    bytes_accessed = int(
        z_p.size * z_p.dtype.itemsize
        + b_pad * L * jnp.dtype(out_dtype).itemsize
        + sum(int(a.size) * a.dtype.itemsize for a in w.values()))

    out = pl.pallas_call(
        _decoder_kernel,
        out_shape=jax.ShapeDtypeStruct((b_pad, L), out_dtype),
        grid=(n_steps,),
        in_specs=[
            pl.BlockSpec((tb, d), lambda i: (i, 0)),         # z batch tile
            pl.BlockSpec(w['wc'].shape, lambda i: (0, 0)),   # resident weights
            pl.BlockSpec(w['bc'].shape, lambda i: (0, 0)),
            pl.BlockSpec(w['m2'].shape, lambda i: (0, 0)),
            pl.BlockSpec(w['b2'].shape, lambda i: (0, 0)),
            pl.BlockSpec(w['m3'].shape, lambda i: (0, 0)),
            pl.BlockSpec(w['b3'].shape, lambda i: (0, 0)),
        ],
        # 64-wide output block (== full array dim): no lane padding, no
        # wrapper column slice, only useful bytes written to HBM.
        out_specs=pl.BlockSpec((tb, L), lambda i: (i, 0)),
        compiler_params=pltpu.CompilerParams(
            dimension_semantics=("parallel",)),
        cost_estimate=pl.CostEstimate(
            flops=flops, transcendentals=0, bytes_accessed=bytes_accessed),
    )(z_p, w['wc'], w['bc'], w['m2'], w['b2'], w['m3'], w['b3'])

    return out if b_pad == b_sz else out[:b_sz]


# ---------------------------------------------------------------------------
# Pure-JAX reference reproducing the PyTorch semantics exactly (NCL layout).
# ---------------------------------------------------------------------------
def reference_forward(z, p):
    h = z @ p['fc_w'].T + p['fc_b']
    h = h.reshape(z.shape[0], C_FC, L)

    def conv(x, w, b):
        y = jax.lax.conv_general_dilated(
            x, w, window_strides=(1,), padding=[(1, 1)],
            dimension_numbers=('NCH', 'OIH', 'NCH'))
        return y + b[None, :, None]

    h = jax.nn.relu(conv(h, p['w1'], p['b1']))
    h = jax.nn.relu(conv(h, p['w2'], p['b2']))
    h = conv(h, p['w3'], p['b3'])
    return h[:, 0, :]   # squeeze(1)


if __name__ == "__main__":
    key = jax.random.PRNGKey(0)
    k_params, k_z = jax.random.split(key)

    params = init_params(k_params)
    z = jax.random.normal(k_z, (2, LATENT_DIM), dtype=jnp.float32)

    ref = jax.block_until_ready(reference_forward(z, params))

    # Exact path: f32 weights, f32 epilogue, f32 output -> the fold / banded
    # conv / tiling changes are exact.
    w_f32 = prepare_weights(params, weight_dtype=jnp.float32)
    fwd_f32 = jax.jit(functools.partial(decoder_conv_forward,
                                        out_dtype=jnp.float32))
    out_f32 = jax.block_until_ready(fwd_f32(z, w_f32))
    assert out_f32.shape == (2, L), out_f32.shape
    assert jnp.allclose(out_f32, ref, atol=1e-4, rtol=1e-4), \
        float(jnp.max(jnp.abs(out_f32 - ref)))

    # Performance path: bf16 weights (bf16 epilogue on v6e/v7x, f32 on v5e),
    # bf16 output -> bf16-level rounding differences only.
    w_bf16 = prepare_weights(params, weight_dtype=jnp.bfloat16)
    fwd_bf16 = jax.jit(decoder_conv_forward)
    out_bf16 = jax.block_until_ready(fwd_bf16(z, w_bf16))
    assert out_bf16.shape == (2, L), out_bf16.shape
    assert jnp.allclose(out_bf16.astype(jnp.float32), ref,
                        atol=5e-2, rtol=5e-2), \
        float(jnp.max(jnp.abs(out_bf16.astype(jnp.float32) - ref)))

    print("KERNEL_OK")
</pallas_src>

<mosaic_0001>
module attributes {stable_mosaic.version = 11 : i64} {
  func.func @_decoder_kernel(%arg0: i32, %arg1: memref<8x32xf32, #tpu.memory_space<vmem>>, %arg2: memref<32x512xf32, #tpu.memory_space<vmem>>, %arg3: memref<1x512xf32, #tpu.memory_space<vmem>>, %arg4: memref<512x256xf32, #tpu.memory_space<vmem>>, %arg5: memref<1x256xf32, #tpu.memory_space<vmem>>, %arg6: memref<256x64xf32, #tpu.memory_space<vmem>>, %arg7: memref<1x64xf32, #tpu.memory_space<vmem>>, %arg8: memref<8x64xf32, #tpu.memory_space<vmem>>) attributes {dimension_semantics = [#tpu.dimension_semantics<parallel>], iteration_bounds = array<i64: 1>, scalar_prefetch = 0 : i64, scratch_operands = 0 : i64, tpu.core_type = #tpu.core_type<tc>, window_params = [{transform_indices = @transform_0, window_bounds = array<i64: 8, 32>}, {pipeline_mode = #tpu.pipeline_mode<synchronous>, transform_indices = @transform_1, window_bounds = array<i64: 32, 512>}, {pipeline_mode = #tpu.pipeline_mode<synchronous>, transform_indices = @transform_2, window_bounds = array<i64: 1, 512>}, {pipeline_mode = #tpu.pipeline_mode<synchronous>, transform_indices = @transform_3, window_bounds = array<i64: 512, 256>}, {pipeline_mode = #tpu.pipeline_mode<synchronous>, transform_indices = @transform_4, window_bounds = array<i64: 1, 256>}, {pipeline_mode = #tpu.pipeline_mode<synchronous>, transform_indices = @transform_5, window_bounds = array<i64: 256, 64>}, {pipeline_mode = #tpu.pipeline_mode<synchronous>, transform_indices = @transform_6, window_bounds = array<i64: 1, 64>}, {transform_indices = @transform_7, window_bounds = array<i64: 8, 64>}]} {
    %c0 = arith.constant 0 : index
    %c0_0 = arith.constant 0 : index
    %0 = vector.load %arg1[%c0, %c0_0] : memref<8x32xf32, #tpu.memory_space<vmem>>, vector<8x32xf32>
    %c0_1 = arith.constant 0 : index
    %c0_2 = arith.constant 0 : index
    %1 = vector.load %arg2[%c0_1, %c0_2] : memref<32x512xf32, #tpu.memory_space<vmem>>, vector<32x512xf32>
    %cst = arith.constant dense<0.000000e+00> : vector<8x512xf32>
    %2 = tpu.matmul %0, %1, %cst {dimension_numbers = #tpu.dot_dimension_numbers<[1], [0], [0], [1], [0, 0, 1, 1], [], []>} : vector<8x32xf32>, vector<32x512xf32>, vector<8x512xf32> -> vector<8x512xf32>
    %c0_3 = arith.constant 0 : index
    %c0_4 = arith.constant 0 : index
    %3 = vector.load %arg3[%c0_3, %c0_4] : memref<1x512xf32, #tpu.memory_space<vmem>>, vector<1x512xf32>
    %4 = vector.broadcast %3 : vector<1x512xf32> to vector<8x512xf32>
    %5 = arith.addf %2, %4 : vector<8x512xf32>
    %cst_5 = arith.constant 0.000000e+00 : f32
    %6 = vector.broadcast %cst_5 : f32 to vector<8x512xf32>
    %7 = arith.maximumf %5, %6 : vector<8x512xf32>
    %c0_6 = arith.constant 0 : index
    %c0_7 = arith.constant 0 : index
    %8 = vector.load %arg4[%c0_6, %c0_7] : memref<512x256xf32, #tpu.memory_space<vmem>>, vector<512x256xf32>
    %cst_8 = arith.constant dense<0.000000e+00> : vector<8x256xf32>
    %9 = tpu.matmul %7, %8, %cst_8 {dimension_numbers = #tpu.dot_dimension_numbers<[1], [0], [0], [1], [0, 0, 1, 1], [], []>} : vector<8x512xf32>, vector<512x256xf32>, vector<8x256xf32> -> vector<8x256xf32>
    %c0_9 = arith.constant 0 : index
    %c0_10 = arith.constant 0 : index
    %10 = vector.load %arg5[%c0_9, %c0_10] : memref<1x256xf32, #tpu.memory_space<vmem>>, vector<1x256xf32>
    %11 = vector.broadcast %10 : vector<1x256xf32> to vector<8x256xf32>
    %12 = arith.addf %9, %11 : vector<8x256xf32>
    %cst_11 = arith.constant 0.000000e+00 : f32
    %13 = vector.broadcast %cst_11 : f32 to vector<8x256xf32>
    %14 = arith.maximumf %12, %13 : vector<8x256xf32>
    %c0_12 = arith.constant 0 : index
    %c0_13 = arith.constant 0 : index
    %15 = vector.load %arg6[%c0_12, %c0_13] : memref<256x64xf32, #tpu.memory_space<vmem>>, vector<256x64xf32>
    %cst_14 = arith.constant dense<0.000000e+00> : vector<8x64xf32>
    %16 = tpu.matmul %14, %15, %cst_14 {dimension_numbers = #tpu.dot_dimension_numbers<[1], [0], [0], [1], [0, 0, 1, 1], [], []>} : vector<8x256xf32>, vector<256x64xf32>, vector<8x64xf32> -> vector<8x64xf32>
    %c0_15 = arith.constant 0 : index
    %c0_16 = arith.constant 0 : index
    %17 = vector.load %arg7[%c0_15, %c0_16] : memref<1x64xf32, #tpu.memory_space<vmem>>, vector<1x64xf32>
    %18 = vector.broadcast %17 : vector<1x64xf32> to vector<8x64xf32>
    %19 = arith.addf %16, %18 : vector<8x64xf32>
    %c0_17 = arith.constant 0 : index
    %c0_18 = arith.constant 0 : index
    %20 = vector.load %arg8[%c0_17, %c0_18] : memref<8x64xf32, #tpu.memory_space<vmem>>, vector<8x64xf32>
    tpu.vector_store %arg8[%c0_17, %c0_18], %19 {strides = array<i32>} : memref<8x64xf32, #tpu.memory_space<vmem>>, vector<8x64xf32>,
    return
  }
  func.func @transform_0(%arg0: i32) -> (i32, i32) {
    %c0_i32 = arith.constant 0 : i32
    %c0_i32_0 = arith.constant 0 : i32
    return %arg0, %c0_i32 : i32, i32
  }
  func.func @transform_1(%arg0: i32) -> (i32, i32) {
    %c0_i32 = arith.constant 0 : i32
    %c0_i32_0 = arith.constant 0 : i32
    %c0_i32_1 = arith.constant 0 : i32
    return %c0_i32, %c0_i32_0 : i32, i32
  }
  func.func @transform_2(%arg0: i32) -> (i32, i32) {
    %c0_i32 = arith.constant 0 : i32
    %c0_i32_0 = arith.constant 0 : i32
    %c0_i32_1 = arith.constant 0 : i32
    return %c0_i32, %c0_i32_0 : i32, i32
  }
  func.func @transform_3(%arg0: i32) -> (i32, i32) {
    %c0_i32 = arith.constant 0 : i32
    %c0_i32_0 = arith.constant 0 : i32
    %c0_i32_1 = arith.constant 0 : i32
    return %c0_i32, %c0_i32_0 : i32, i32
  }
  func.func @transform_4(%arg0: i32) -> (i32, i32) {
    %c0_i32 = arith.constant 0 : i32
    %c0_i32_0 = arith.constant 0 : i32
    %c0_i32_1 = arith.constant 0 : i32
    return %c0_i32, %c0_i32_0 : i32, i32
  }
  func.func @transform_5(%arg0: i32) -> (i32, i32) {
    %c0_i32 = arith.constant 0 : i32
    %c0_i32_0 = arith.constant 0 : i32
    %c0_i32_1 = arith.constant 0 : i32
    return %c0_i32, %c0_i32_0 : i32, i32
  }
  func.func @transform_6(%arg0: i32) -> (i32, i32) {
    %c0_i32 = arith.constant 0 : i32
    %c0_i32_0 = arith.constant 0 : i32
    %c0_i32_1 = arith.constant 0 : i32
    return %c0_i32, %c0_i32_0 : i32, i32
  }
  func.func @transform_7(%arg0: i32) -> (i32, i32) {
    %c0_i32 = arith.constant 0 : i32
    %c0_i32_0 = arith.constant 0 : i32
    return %arg0, %c0_i32 : i32, i32
  }
}

</mosaic_0001>

<llo_original>
// kernel: decoder_conv_forward.1
$region0: #{decoder_conv_forward.1}
  #allocation0 [shape = 'u32[]', space=smem, size = 0x4, offset = 0x4, fixed_abs, tag = 'smem constant byte address 0x4 - core index']
  #allocation1 [shape = 'u32[144,128]{1,0:T(1,128)}', space=vmem, size = 0x12000, scoped, tag = 'internal scratch']
  %s0 = inlined_call_operand.vmem [shape: f32[8,32], index: 0, kind: input, shape index: {}]
  %s1 = inlined_call_operand.vmem [shape: f32[32,512], index: 1, kind: input, shape index: {}]
  %s2 = inlined_call_operand.vmem [shape: f32[1,512], index: 2, kind: input, shape index: {}]
  %s3 = inlined_call_operand.hbm [shape: f32[512,256], index: 3, kind: input, shape index: {}]
  %s4 = inlined_call_operand.vmem [shape: f32[1,256], index: 4, kind: input, shape index: {}]
  %s5 = inlined_call_operand.vmem [shape: f32[256,64], index: 5, kind: input, shape index: {}]
  %s6 = inlined_call_operand.vmem [shape: f32[1,64], index: 6, kind: input, shape index: {}]
  %s7 = inlined_call_operand.vmem [shape: f32[8,64], index: 7, kind: output, shape index: {}]
  %s8 = sld [smem:[#allocation0]]
  $region42: #{decoder_conv_forward.1} parent=0
    _
  %s10 = ssub.s32 1, %s8
  %s11 = scalar_select 0, %s10, %s8
  $region1: #{decoder_conv_forward.1} parent=0
    #allocation2 [shape = 'u8[524288]{0}', space=vmem, size = 0x80000, scoped, tag = 'input window, operand 3, single buffered']
    #allocation3 [shape = 's32[1]{0}', space=sflag, size = 0x4, scoped, tag = 'scoped memory for decoder_conv_forward.1']
    %12 = vsyncpa [#allocation3], 0
    // Predicated region
    $region2: #{decoder_conv_forward.1} parent=1 // pred_check
      _
    $region3: #{decoder_conv_forward.1} parent=1 // pred_check_branch
      %14 = sbr.rel (0) target = $region5
    $region4: #{decoder_conv_forward.1} parent=1 // pred_region
      _
    $region5: #{decoder_conv_forward.1} parent=1 // pred_fallthru
      _
    // Predicated region
    $region6: #{decoder_conv_forward.1} parent=1 // pred_check
      _
    $region7: #{decoder_conv_forward.1} parent=1 // pred_check_branch
      %16 = sbr.rel (0) target = $region9
    $region8: #{decoder_conv_forward.1} parent=1 // pred_region
      _
    $region9: #{decoder_conv_forward.1} parent=1 // pred_fallthru
      _
    // Predicated region
    $region10: #{decoder_conv_forward.1} parent=1 // pred_check
      _
    $region11: #{decoder_conv_forward.1} parent=1 // pred_check_branch
      %18 = sbr.rel (0) target = $region13
    $region12: #{decoder_conv_forward.1} parent=1 // pred_region
      _
    $region13: #{decoder_conv_forward.1} parent=1 // pred_fallthru
      _
    // Predicated region
    $region14: #{decoder_conv_forward.1} parent=1 // pred_check
      _
    $region15: #{decoder_conv_forward.1} parent=1 // pred_check_branch
      %20 = sbr.rel (0) target = $region17
    $region16: #{decoder_conv_forward.1} parent=1 // pred_region
      %s22 = ssub.s32 16384, 16384
      %23 = vsyncadd [#allocation3], %s22
      %s24 = sshll.u32 [#allocation2], 4
      %s25 = int_to_ptr.vmem [resolvable:$true] %s24
      %30 = dma.hbm_to_vmem [thread:$0]  %s3, 16384, %s25, [#allocation3], 256, 256, 16
    $region17: #{decoder_conv_forward.1} parent=1 // pred_fallthru
      _
    // Predicated region
    $region18: #{decoder_conv_forward.1} parent=1 // pred_check
      _
    $region19: #{decoder_conv_forward.1} parent=1 // pred_check_branch
      %32 = sbr.rel (0) target = $region21
    $region20: #{decoder_conv_forward.1} parent=1 // pred_region
      _
    $region21: #{decoder_conv_forward.1} parent=1 // pred_fallthru
      _
    // Predicated region
    $region22: #{decoder_conv_forward.1} parent=1 // pred_check
      _
    $region23: #{decoder_conv_forward.1} parent=1 // pred_check_branch
      %34 = sbr.rel (0) target = $region25
    $region24: #{decoder_conv_forward.1} parent=1 // pred_region
      _
    $region25: #{decoder_conv_forward.1} parent=1 // pred_fallthru
      _
    // Predicated region
    $region26: #{decoder_conv_forward.1} parent=1 // pred_check
      _
    $region27: #{decoder_conv_forward.1} parent=1 // pred_check_branch
      %36 = sbr.rel (0) target = $region29
    $region28: #{decoder_conv_forward.1} parent=1 // pred_region
      _
    $region29: #{decoder_conv_forward.1} parent=1 // pred_fallthru
      _
    // Predicated region
    $region30: #{decoder_conv_forward.1} parent=1 // pred_check
      _
    $region31: #{decoder_conv_forward.1} parent=1 // pred_check_branch
      %38 = sbr.rel (0) target = $region33
    $region32: #{decoder_conv_forward.1} parent=1 // pred_region
      %39 = dma.done [#allocation3], 16384
    $region33: #{decoder_conv_forward.1} parent=1 // pred_fallthru
      _
    %v40 = vld [vmem:[%s0] sm:$0xff]
    %v41 = vld [vmem:[%s1] sm:$0xff]
    %v42 = vld [vmem:[%s1 + $0x8] sm:$0xff]
    %v43 = vld [vmem:[%s1 + $0x10] sm:$0xff]
    %v44 = vld [vmem:[%s1 + $0x18] sm:$0xff]
    %v45 = vld [vmem:[%s1 + $0x20] sm:$0xff]
    %v46 = vld [vmem:[%s1 + $0x28] sm:$0xff]
    %v47 = vld [vmem:[%s1 + $0x30] sm:$0xff]
    %v48 = vld [vmem:[%s1 + $0x38] sm:$0xff]
    %v49 = vld [vmem:[%s1 + $0x40] sm:$0xff]
    %v50 = vld [vmem:[%s1 + $0x48] sm:$0xff]
    %v51 = vld [vmem:[%s1 + $0x50] sm:$0xff]
    %v52 = vld [vmem:[%s1 + $0x58] sm:$0xff]
    %v53 = vld [vmem:[%s1 + $0x60] sm:$0xff]
    %v54 = vld [vmem:[%s1 + $0x68] sm:$0xff]
    %v55 = vld [vmem:[%s1 + $0x70] sm:$0xff]
    %v56 = vld [vmem:[%s1 + $0x78] sm:$0xff]
    %v57 = vld [vmem:[%s2] sm:$0xf]
    %v59 = vlaneseq
    %v60 = vshrl.u32 %v59, 7
    %v61 = vsub.s32 0, %v60
    %v62 = vrot.slane %v57, %v61
    %v63 = vlaneseq
    %v64 = vshrl.u32 %v63, 7
    %v65 = vsub.s32 1, %v64
    %v66 = vrot.slane %v57, %v65
    %v67 = vlaneseq
    %v68 = vshrl.u32 %v67, 7
    %v69 = vsub.s32 2, %v68
    %v70 = vrot.slane %v57, %v69
    %v71 = vlaneseq
    %v72 = vshrl.u32 %v71, 7
    %v73 = vsub.s32 3, %v72
    %v74 = vrot.slane %v57, %v73
    %vm79 = vcmask 261120
    %v81 = vsel %vm79, %v40, 0
    %83 = vmatprep.subr.mxu0 %v42
    %84 = vmatpush1.msra.mxu0 %v41
    %85 = vmatprep.subr.mxu0 %v46
    %86 = vmatpush1.msra.mxu0 %v45
    %87 = vmatprep.subr.mxu0 %v50
    %88 = vmatpush1.msra.mxu0 %v49
    %89 = vmatprep.subr.mxu0 %v54
    %90 = vmatpush1.msra.mxu0 %v53
    %91 = vmatprep.subr.mxu0 0.0
    %92 = vmatpush1.msra.mxu0 0.0
    %93 = vmatprep.subr.mxu0 0.0
    %94 = vmatpush1.msra.mxu0 0.0
    %95 = vmatprep.subr.mxu0 0.0
    %96 = vmatpush1.msra.mxu0 0.0
    %97 = vmatprep.subr.mxu0 0.0
    %98 = vmatpush1.msra.mxu0 0.0
    %99 = vmatprep.subr.mxu0 0.0
    %100 = vmatpush1.msra.mxu0 0.0
    %101 = vmatprep.subr.mxu0 0.0
    %102 = vmatpush1.msra.mxu0 0.0
    %103 = vmatprep.subr.mxu0 0.0
    %104 = vmatpush1.msra.mxu0 0.0
    %105 = vmatprep.subr.mxu0 0.0
    %106 = vmatpush1.msra.mxu0 0.0
    %107 = vmatprep.subr.mxu0 0.0
    %108 = vmatpush1.msra.mxu0 0.0
    %109 = vmatprep.subr.mxu0 0.0
    %110 = vmatpush1.msra.mxu0 0.0
    %111 = vmatprep.subr.mxu0 0.0
    %112 = vmatpush1.msra.mxu0 0.0
    %113 = vmatprep.subr.mxu0 0.0
    %114 = vmatpush1.msra.mxu0 0.0
    %115 = vmatprep.subr.mxu0 0.0
    %116 = vmatpush1.msra.mxu0 0.0
    %117 = vmatprep.subr.mxu0 0.0
    %118 = vmatpush1.msra.mxu0 0.0
    %119 = vmatprep.subr.mxu0 0.0
    %120 = vmatpush1.msra.mxu0 0.0
    %121 = vmatprep.subr.mxu0 0.0
    %122 = vmatpush1.msra.mxu0 0.0
    %123 = vmatprep.subr.mxu0 0.0
    %124 = vmatpush1.msra.mxu0 0.0
    %125 = vmatprep.subr.mxu0 0.0
    %126 = vmatpush1.msra.mxu0 0.0
    %127 = vmatprep.subr.mxu0 0.0
    %128 = vmatpush1.msra.mxu0 0.0
    %129 = vmatprep.subr.mxu0 0.0
    %130 = vmatpush1.msra.mxu0 0.0
    %131 = vmatprep.subr.mxu0 0.0
    %132 = vmatpush1.msra.mxu0 0.0
    %133 = vmatprep.subr.mxu0 0.0
    %134 = vmatpush1.msra.mxu0 0.0
    %135 = vmatprep.subr.mxu0 0.0
    %136 = vmatpush1.msra.mxu0 0.0
    %137 = vmatprep.subr.mxu0 0.0
    %138 = vmatpush1.msra.mxu0 0.0
    %139 = vmatprep.subr.mxu0 0.0
    %140 = vmatpush1.msra.mxu0 0.0
    %141 = vmatprep.subr.mxu0 0.0
    %142 = vmatpush1.msra.mxu0 0.0
    %143 = vmatprep.subr.mxu0 0.0
    %144 = vmatpush1.msra.mxu0 0.0
    %145 = vmatprep.subr.mxu0 0.0
    %146 = vmatpush1.msra.mxu0 0.0
    %147 = vmatprep.mubr.f32.mxu0 0.0
    %148 = vmatmul.mubr.f32.gmra.mrb[0].mxu0 %v81
    %v149 = vpop.f32.mrb[0].mxu0
    %v150 = vadd.f32 %v62, %v149
    %v151 = vpop.f32.mrb[0].mxu0
    %v152 = vadd.f32 %v66, %v151
    %153 = vdwg.mxu0
    %154 = vmatprep.subr.mxu0 %v44
    %155 = vmatpush1.msra.mxu0 %v43
    %156 = vmatprep.subr.mxu0 %v48
    %157 = vmatpush1.msra.mxu0 %v47
    %158 = vmatprep.subr.mxu0 %v52
    %159 = vmatpush1.msra.mxu0 %v51
    %160 = vmatprep.subr.mxu0 %v56
    %161 = vmatpush1.msra.mxu0 %v55
    %162 = vmatprep.subr.mxu0 0.0
    %163 = vmatpush1.msra.mxu0 0.0
    %164 = vmatprep.subr.mxu0 0.0
    %165 = vmatpush1.msra.mxu0 0.0
    %166 = vmatprep.subr.mxu0 0.0
    %167 = vmatpush1.msra.mxu0 0.0
    %168 = vmatprep.subr.mxu0 0.0
    %169 = vmatpush1.msra.mxu0 0.0
    %170 = vmatprep.subr.mxu0 0.0
    %171 = vmatpush1.msra.mxu0 0.0
    %172 = vmatprep.subr.mxu0 0.0
    %173 = vmatpush1.msra.mxu0 0.0
    %174 = vmatprep.subr.mxu0 0.0
    %175 = vmatpush1.msra.mxu0 0.0
    %176 = vmatprep.subr.mxu0 0.0
    %177 = vmatpush1.msra.mxu0 0.0
    %178 = vmatprep.subr.mxu0 0.0
    %179 = vmatpush1.msra.mxu0 0.0
    %180 = vmatprep.subr.mxu0 0.0
    %181 = vmatpush1.msra.mxu0 0.0
    %182 = vmatprep.subr.mxu0 0.0
    %183 = vmatpush1.msra.mxu0 0.0
    %184 = vmatprep.subr.mxu0 0.0
    %185 = vmatpush1.msra.mxu0 0.0
    %186 = vmatprep.subr.mxu0 0.0
    %187 = vmatpush1.msra.mxu0 0.0
    %188 = vmatprep.subr.mxu0 0.0
    %189 = vmatpush1.msra.mxu0 0.0
    %190 = vmatprep.subr.mxu0 0.0
    %191 = vmatpush1.msra.mxu0 0.0
    %192 = vmatprep.subr.mxu0 0.0
    %193 = vmatpush1.msra.mxu0 0.0
    %194 = vmatprep.subr.mxu0 0.0
    %195 = vmatpush1.msra.mxu0 0.0
    %196 = vmatprep.subr.mxu0 0.0
    %197 = vmatpush1.msra.mxu0 0.0
    %198 = vmatprep.subr.mxu0 0.0
    %199 = vmatpush1.msra.mxu0 0.0
    %200 = vmatprep.subr.mxu0 0.0
    %201 = vmatpush1.msra.mxu0 0.0
    %202 = vmatprep.subr.mxu0 0.0
    %203 = vmatpush1.msra.mxu0 0.0
    %204 = vmatprep.subr.mxu0 0.0
    %205 = vmatpush1.msra.mxu0 0.0
    %206 = vmatprep.subr.mxu0 0.0
    %207 = vmatpush1.msra.mxu0 0.0
    %208 = vmatprep.subr.mxu0 0.0
    %209 = vmatpush1.msra.mxu0 0.0
    %210 = vmatprep.subr.mxu0 0.0
    %211 = vmatpush1.msra.mxu0 0.0
    %212 = vmatprep.subr.mxu0 0.0
    %213 = vmatpush1.msra.mxu0 0.0
    %214 = vmatprep.subr.mxu0 0.0
    %215 = vmatpush1.msra.mxu0 0.0
    %216 = vmatprep.subr.mxu0 0.0
    %217 = vmatpush1.msra.mxu0 0.0
    %218 = vmatprep.mubr.f32.mxu0 0.0
    %219 = vmatmul.mubr.f32.gmra.mrb[0].mxu0 %v81
    %v220 = vpop.f32.mrb[0].mxu0
    %v221 = vadd.f32 %v70, %v220
    %v222 = vpop.f32.mrb[0].mxu0
    %v223 = vadd.f32 %v74, %v222
    %224 = vdwg.mxu0
    %v225 = vmax.f32 %v150, 0.0
    %v226 = vmax.f32 %v152, 0.0
    %v227 = vmax.f32 %v221, 0.0
    %v228 = vmax.f32 %v223, 0.0
    %v229 = vld [vmem:[#allocation2] sm:$0xff]
    %v230 = vld [vmem:[#allocation2 + $0x8] sm:$0xff]
    %v231 = vld [vmem:[#allocation2 + $0x10] sm:$0xff]
    %v232 = vld [vmem:[#allocation2 + $0x18] sm:$0xff]
    %v233 = vld [vmem:[#allocation2 + $0x20] sm:$0xff]
    %v234 = vld [vmem:[#allocation2 + $0x28] sm:$0xff]
    %v235 = vld [vmem:[#allocation2 + $0x30] sm:$0xff]
    %v236 = vld [vmem:[#allocation2 + $0x38] sm:$0xff]
    %v237 = vld [vmem:[#allocation2 + $0x40] sm:$0xff]
    %v238 = vld [vmem:[#allocation2 + $0x48] sm:$0xff]
    %v239 = vld [vmem:[#allocation2 + $0x50] sm:$0xff]
    %v240 = vld [vmem:[#allocation2 + $0x58] sm:$0xff]
    %v241 = vld [vmem:[#allocation2 + $0x60] sm:$0xff]
    %v242 = vld [vmem:[#allocation2 + $0x68] sm:$0xff]
    %v243 = vld [vmem:[#allocation2 + $0x70] sm:$0xff]
    %v244 = vld [vmem:[#allocation2 + $0x78] sm:$0xff]
    %v245 = vld [vmem:[#allocation2 + $0x80] sm:$0xff]
    %v246 = vld [vmem:[#allocation2 + $0x88] sm:$0xff]
    %v247 = vld [vmem:[#allocation2 + $0x90] sm:$0xff]
    %v248 = vld [vmem:[#allocation2 + $0x98] sm:$0xff]
    %v249 = vld [vmem:[#allocation2 + $0xa0] sm:$0xff]
    %v250 = vld [vmem:[#allocation2 + $0xa8] sm:$0xff]
    %v251 = vld [vmem:[#allocation2 + $0xb0] sm:$0xff]
    %v252 = vld [vmem:[#allocation2 + $0xb8] sm:$0xff]
    %v253 = vld [vmem:[#allocation2 + $0xc0] sm:$0xff]
    %v254 = vld [vmem:[#allocation2 + $0xc8] sm:$0xff]
    %v255 = vld [vmem:[#allocation2 + $0xd0] sm:$0xff]
    %v256 = vld [vmem:[#allocation2 + $0xd8] sm:$0xff]
    %v257 = vld [vmem:[#allocation2 + $0xe0] sm:$0xff]
    %v258 = vld [vmem:[#allocation2 + $0xe8] sm:$0xff]
    %v259 = vld [vmem:[#allocation2 + $0xf0] sm:$0xff]
    %v260 = vld [vmem:[#allocation2 + $0xf8] sm:$0xff]
    %v261 = vld [vmem:[#allocation2 + $0x100] sm:$0xff]
    %v262 = vld [vmem:[#allocation2 + $0x108] sm:$0xff]
    %v263 = vld [vmem:[#allocation2 + $0x110] sm:$0xff]
    %v264 = vld [vmem:[#allocation2 + $0x118] sm:$0xff]
    %v265 = vld [vmem:[#allocation2 + $0x120] sm:$0xff]
    %v266 = vld [vmem:[#allocation2 + $0x128] sm:$0xff]
    %v267 = vld [vmem:[#allocation2 + $0x130] sm:$0xff]
    %v268 = vld [vmem:[#allocation2 + $0x138] sm:$0xff]
    %v269 = vld [vmem:[#allocation2 + $0x140] sm:$0xff]
    %v270 = vld [vmem:[#allocation2 + $0x148] sm:$0xff]
    %v271 = vld [vmem:[#allocation2 + $0x150] sm:$0xff]
    %v272 = vld [vmem:[#allocation2 + $0x158] sm:$0xff]
    %v273 = vld [vmem:[#allocation2 + $0x160] sm:$0xff]
    %v274 = vld [vmem:[#allocation2 + $0x168] sm:$0xff]
    %v275 = vld [vmem:[#allocation2 + $0x170] sm:$0xff]
    %v276 = vld [vmem:[#allocation2 + $0x178] sm:$0xff]
    %v277 = vld [vmem:[#allocation2 + $0x180] sm:$0xff]
    %v278 = vld [vmem:[#allocation2 + $0x188] sm:$0xff]
    %v279 = vld [vmem:[#allocation2 + $0x190] sm:$0xff]
    %v280 = vld [vmem:[#allocation2 + $0x198] sm:$0xff]
    %v281 = vld [vmem:[#allocation2 + $0x1a0] sm:$0xff]
    %v282 = vld [vmem:[#allocation2 + $0x1a8] sm:$0xff]
    %v283 = vld [vmem:[#allocation2 + $0x1b0] sm:$0xff]
    %v284 = vld [vmem:[#allocation2 + $0x1b8] sm:$0xff]
    %v285 = vld [vmem:[#allocation2 + $0x1c0] sm:$0xff]
    %v286 = vld [vmem:[#allocation2 + $0x1c8] sm:$0xff]
    %v287 = vld [vmem:[#allocation2 + $0x1d0] sm:$0xff]
    %v288 = vld [vmem:[#allocation2 + $0x1d8] sm:$0xff]
    %v289 = vld [vmem:[#allocation2 + $0x1e0] sm:$0xff]
    %v290 = vld [vmem:[#allocation2 + $0x1e8] sm:$0xff]
    %v291 = vld [vmem:[#allocation2 + $0x1f0] sm:$0xff]
    %v292 = vld [vmem:[#allocation2 + $0x1f8] sm:$0xff]
    %v293 = vld [vmem:[#allocation2 + $0x200] sm:$0xff]
    %v294 = vld [vmem:[#allocation2 + $0x208] sm:$0xff]
    %v295 = vld [vmem:[#allocation2 + $0x210] sm:$0xff]
    %v296 = vld [vmem:[#allocation2 + $0x218] sm:$0xff]
    %v297 = vld [vmem:[#allocation2 + $0x220] sm:$0xff]
    %v298 = vld [vmem:[#allocation2 + $0x228] sm:$0xff]
    %v299 = vld [vmem:[#allocation2 + $0x230] sm:$0xff]
    %v300 = vld [vmem:[#allocation2 + $0x238] sm:$0xff]
    %v301 = vld [vmem:[#allocation2 + $0x240] sm:$0xff]
    %v302 = vld [vmem:[#allocation2 + $0x248] sm:$0xff]
    %v303 = vld [vmem:[#allocation2 + $0x250] sm:$0xff]
    %v304 = vld [vmem:[#allocation2 + $0x258] sm:$0xff]
    %v305 = vld [vmem:[#allocation2 + $0x260] sm:$0xff]
    %v306 = vld [vmem:[#allocation2 + $0x268] sm:$0xff]
    %v307 = vld [vmem:[#allocation2 + $0x270] sm:$0xff]
    %v308 = vld [vmem:[#allocation2 + $0x278] sm:$0xff]
    %v309 = vld [vmem:[#allocation2 + $0x280] sm:$0xff]
    %v310 = vld [vmem:[#allocation2 + $0x288] sm:$0xff]
    %v311 = vld [vmem:[#allocation2 + $0x290] sm:$0xff]
    %v312 = vld [vmem:[#allocation2 + $0x298] sm:$0xff]
    %v313 = vld [vmem:[#allocation2 + $0x2a0] sm:$0xff]
    %v314 = vld [vmem:[#allocation2 + $0x2a8] sm:$0xff]
    %v315 = vld [vmem:[#allocation2 + $0x2b0] sm:$0xff]
    %v316 = vld [vmem:[#allocation2 + $0x2b8] sm:$0xff]
    %v317 = vld [vmem:[#allocation2 + $0x2c0] sm:$0xff]
    %v318 = vld [vmem:[#allocation2 + $0x2c8] sm:$0xff]
    %v319 = vld [vmem:[#allocation2 + $0x2d0] sm:$0xff]
    %v320 = vld [vmem:[#allocation2 + $0x2d8] sm:$0xff]
    %v321 = vld [vmem:[#allocation2 + $0x2e0] sm:$0xff]
    %v322 = vld [vmem:[#allocation2 + $0x2e8] sm:$0xff]
    %v323 = vld [vmem:[#allocation2 + $0x2f0] sm:$0xff]
    %v324 = vld [vmem:[#allocation2 + $0x2f8] sm:$0xff]
    %v325 = vld [vmem:[#allocation2 + $0x300] sm:$0xff]
    %v326 = vld [vmem:[#allocation2 + $0x308] sm:$0xff]
    %v327 = vld [vmem:[#allocation2 + $0x310] sm:$0xff]
    %v328 = vld [vmem:[#allocation2 + $0x318] sm:$0xff]
    %v329 = vld [vmem:[#allocation2 + $0x320] sm:$0xff]
    %v330 = vld [vmem:[#allocation2 + $0x328] sm:$0xff]
    %v331 = vld [vmem:[#allocation2 + $0x330] sm:$0xff]
    %v332 = vld [vmem:[#allocation2 + $0x338] sm:$0xff]
    %v333 = vld [vmem:[#allocation2 + $0x340] sm:$0xff]
    %v334 = vld [vmem:[#allocation2 + $0x348] sm:$0xff]
    %v335 = vld [vmem:[#allocation2 + $0x350] sm:$0xff]
    %v336 = vld [vmem:[#allocation2 + $0x358] sm:$0xff]
    %v337 = vld [vmem:[#allocation2 + $0x360] sm:$0xff]
    %v338 = vld [vmem:[#allocation2 + $0x368] sm:$0xff]
    %v339 = vld [vmem:[#allocation2 + $0x370] sm:$0xff]
    %v340 = vld [vmem:[#allocation2 + $0x378] sm:$0xff]
    %v341 = vld [vmem:[#allocation2 + $0x380] sm:$0xff]
    %v342 = vld [vmem:[#allocation2 + $0x388] sm:$0xff]
    %v343 = vld [vmem:[#allocation2 + $0x390] sm:$0xff]
    %v344 = vld [vmem:[#allocation2 + $0x398] sm:$0xff]
    %v345 = vld [vmem:[#allocation2 + $0x3a0] sm:$0xff]
    %v346 = vld [vmem:[#allocation2 + $0x3a8] sm:$0xff]
    %v347 = vld [vmem:[#allocation2 + $0x3b0] sm:$0xff]
    %v348 = vld [vmem:[#allocation2 + $0x3b8] sm:$0xff]
    %v349 = vld [vmem:[#allocation2 + $0x3c0] sm:$0xff]
    %v350 = vld [vmem:[#allocation2 + $0x3c8] sm:$0xff]
    %v351 = vld [vmem:[#allocation2 + $0x3d0] sm:$0xff]
    %v352 = vld [vmem:[#allocation2 + $0x3d8] sm:$0xff]
    %v353 = vld [vmem:[#allocation2 + $0x3e0] sm:$0xff]
    %v354 = vld [vmem:[#allocation2 + $0x3e8] sm:$0xff]
    %v355 = vld [vmem:[#allocation2 + $0x3f0] sm:$0xff]
    %v356 = vld [vmem:[#allocation2 + $0x3f8] sm:$0xff]
    %v357 = vld [vmem:[%s4] sm:$0x3]
    %v359 = vlaneseq
    %v360 = vshrl.u32 %v359, 7
    %v361 = vsub.s32 0, %v360
    %v362 = vrot.slane %v357, %v361
    %v363 = vlaneseq
    %v364 = vshrl.u32 %v363, 7
    %v365 = vsub.s32 1, %v364
    %v366 = vrot.slane %v357, %v365
    %369 = vmatprep.subr.mxu0 %v230
    %370 = vmatpush1.msra.mxu0 %v229
    %371 = vmatprep.subr.mxu0 %v232
    %372 = vmatpush1.msra.mxu0 %v231
    %373 = vmatprep.subr.mxu0 %v234
    %374 = vmatpush1.msra.mxu0 %v233
    %375 = vmatprep.subr.mxu0 %v236
    %376 = vmatpush1.msra.mxu0 %v235
    %377 = vmatprep.subr.mxu0 %v238
    %378 = vmatpush1.msra.mxu0 %v237
    %379 = vmatprep.subr.mxu0 %v240
    %380 = vmatpush1.msra.mxu0 %v239
    %381 = vmatprep.subr.mxu0 %v242
    %382 = vmatpush1.msra.mxu0 %v241
    %383 = vmatprep.subr.mxu0 %v244
    %384 = vmatpush1.msra.mxu0 %v243
    %385 = vmatprep.subr.mxu0 %v246
    %386 = vmatpush1.msra.mxu0 %v245
    %387 = vmatprep.subr.mxu0 %v248
    %388 = vmatpush1.msra.mxu0 %v247
    %389 = vmatprep.subr.mxu0 %v250
    %390 = vmatpush1.msra.mxu0 %v249
    %391 = vmatprep.subr.mxu0 %v252
    %392 = vmatpush1.msra.mxu0 %v251
    %393 = vmatprep.subr.mxu0 %v254
    %394 = vmatpush1.msra.mxu0 %v253
    %395 = vmatprep.subr.mxu0 %v256
    %396 = vmatpush1.msra.mxu0 %v255
    %397 = vmatprep.subr.mxu0 %v258
    %398 = vmatpush1.msra.mxu0 %v257
    %399 = vmatprep.subr.mxu0 %v260
    %400 = vmatpush1.msra.mxu0 %v259
    %401 = vmatprep.subr.mxu0 %v262
    %402 = vmatpush1.msra.mxu0 %v261
    %403 = vmatprep.subr.mxu0 %v264
    %404 = vmatpush1.msra.mxu0 %v263
    %405 = vmatprep.subr.mxu0 %v266
    %406 = vmatpush1.msra.mxu0 %v265
    %407 = vmatprep.subr.mxu0 %v268
    %408 = vmatpush1.msra.mxu0 %v267
    %409 = vmatprep.subr.mxu0 %v270
    %410 = vmatpush1.msra.mxu0 %v269
    %411 = vmatprep.subr.mxu0 %v272
    %412 = vmatpush1.msra.mxu0 %v271
    %413 = vmatprep.subr.mxu0 %v274
    %414 = vmatpush1.msra.mxu0 %v273
    %415 = vmatprep.subr.mxu0 %v276
    %416 = vmatpush1.msra.mxu0 %v275
    %417 = vmatprep.subr.mxu0 %v278
    %418 = vmatpush1.msra.mxu0 %v277
    %419 = vmatprep.subr.mxu0 %v280
    %420 = vmatpush1.msra.mxu0 %v279
    %421 = vmatprep.subr.mxu0 %v282
    %422 = vmatpush1.msra.mxu0 %v281
    %423 = vmatprep.subr.mxu0 %v284
    %424 = vmatpush1.msra.mxu0 %v283
    %425 = vmatprep.subr.mxu0 %v286
    %426 = vmatpush1.msra.mxu0 %v285
    %427 = vmatprep.subr.mxu0 %v288
    %428 = vmatpush1.msra.mxu0 %v287
    %429 = vmatprep.subr.mxu0 %v290
    %430 = vmatpush1.msra.mxu0 %v289
    %431 = vmatprep.subr.mxu0 %v292
    %432 = vmatpush1.msra.mxu0 %v291
    %433 = vmatprep.mubr.f32.mxu0 %v226
    %434 = vmatmul.mubr.f32.gmra.mrb[0].mxu0 %v225
    %v435 = vpop.f32.mrb[0].mxu0
    %v436 = vadd.f32 %v362, %v435
    %v437 = vpop.f32.mrb[0].mxu0
    %v438 = vadd.f32 %v366, %v437
    %439 = vdwg.mxu0
    %440 = vmatprep.subr.mxu0 %v294
    %441 = vmatpush1.msra.mxu0 %v293
    %442 = vmatprep.subr.mxu0 %v296
    %443 = vmatpush1.msra.mxu0 %v295
    %444 = vmatprep.subr.mxu0 %v298
    %445 = vmatpush1.msra.mxu0 %v297
    %446 = vmatprep.subr.mxu0 %v300
    %447 = vmatpush1.msra.mxu0 %v299
    %448 = vmatprep.subr.mxu0 %v302
    %449 = vmatpush1.msra.mxu0 %v301
    %450 = vmatprep.subr.mxu0 %v304
    %451 = vmatpush1.msra.mxu0 %v303
    %452 = vmatprep.subr.mxu0 %v306
    %453 = vmatpush1.msra.mxu0 %v305
    %454 = vmatprep.subr.mxu0 %v308
    %455 = vmatpush1.msra.mxu0 %v307
    %456 = vmatprep.subr.mxu0 %v310
    %457 = vmatpush1.msra.mxu0 %v309
    %458 = vmatprep.subr.mxu0 %v312
    %459 = vmatpush1.msra.mxu0 %v311
    %460 = vmatprep.subr.mxu0 %v314
    %461 = vmatpush1.msra.mxu0 %v313
    %462 = vmatprep.subr.mxu0 %v316
    %463 = vmatpush1.msra.mxu0 %v315
    %464 = vmatprep.subr.mxu0 %v318
    %465 = vmatpush1.msra.mxu0 %v317
    %466 = vmatprep.subr.mxu0 %v320
    %467 = vmatpush1.msra.mxu0 %v319
    %468 = vmatprep.subr.mxu0 %v322
    %469 = vmatpush1.msra.mxu0 %v321
    %470 = vmatprep.subr.mxu0 %v324
    %471 = vmatpush1.msra.mxu0 %v323
    %472 = vmatprep.subr.mxu0 %v326
    %473 = vmatpush1.msra.mxu0 %v325
    %474 = vmatprep.subr.mxu0 %v328
    %475 = vmatpush1.msra.mxu0 %v327
    %476 = vmatprep.subr.mxu0 %v330
    %477 = vmatpush1.msra.mxu0 %v329
    %478 = vmatprep.subr.mxu0 %v332
    %479 = vmatpush1.msra.mxu0 %v331
    %480 = vmatprep.subr.mxu0 %v334
    %481 = vmatpush1.msra.mxu0 %v333
    %482 = vmatprep.subr.mxu0 %v336
    %483 = vmatpush1.msra.mxu0 %v335
    %484 = vmatprep.subr.mxu0 %v338
    %485 = vmatpush1.msra.mxu0 %v337
    %486 = vmatprep.subr.mxu0 %v340
    %487 = vmatpush1.msra.mxu0 %v339
    %488 = vmatprep.subr.mxu0 %v342
    %489 = vmatpush1.msra.mxu0 %v341
    %490 = vmatprep.subr.mxu0 %v344
    %491 = vmatpush1.msra.mxu0 %v343
    %492 = vmatprep.subr.mxu0 %v346
    %493 = vmatpush1.msra.mxu0 %v345
    %494 = vmatprep.subr.mxu0 %v348
    %495 = vmatpush1.msra.mxu0 %v347
    %496 = vmatprep.subr.mxu0 %v350
    %497 = vmatpush1.msra.mxu0 %v349
    %498 = vmatprep.subr.mxu0 %v352
    %499 = vmatpush1.msra.mxu0 %v351
    %500 = vmatprep.subr.mxu0 %v354
    %501 = vmatpush1.msra.mxu0 %v353
    %502 = vmatprep.subr.mxu0 %v356
    %503 = vmatpush1.msra.mxu0 %v355
    %504 = vmatprep.mubr.f32.mxu0 %v228
    %505 = vmatmul.mubr.f32.gmra.mrb[0].mxu0 %v227
    %v506 = vpop.f32.mrb[0].mxu0
    %v507 = vadd.f32 %v436, %v506
    %v508 = vpop.f32.mrb[0].mxu0
    %v509 = vadd.f32 %v438, %v508
    %510 = vdwg.mxu0
    %v511 = vmax.f32 %v507, 0.0
    %v512 = vmax.f32 %v509, 0.0
    %v513 = vld [vmem:[%s5] sm:$0xff]
    %v514 = vld [vmem:[%s5 + $0x8] sm:$0xff]
    %v515 = vld [vmem:[%s5 + $0x10] sm:$0xff]
    %v516 = vld [vmem:[%s5 + $0x18] sm:$0xff]
    %v517 = vld [vmem:[%s5 + $0x20] sm:$0xff]
    %v518 = vld [vmem:[%s5 + $0x28] sm:$0xff]
    %v519 = vld [vmem:[%s5 + $0x30] sm:$0xff]
    %v520 = vld [vmem:[%s5 + $0x38] sm:$0xff]
    %v521 = vld [vmem:[%s5 + $0x40] sm:$0xff]
    %v522 = vld [vmem:[%s5 + $0x48] sm:$0xff]
    %v523 = vld [vmem:[%s5 + $0x50] sm:$0xff]
    %v524 = vld [vmem:[%s5 + $0x58] sm:$0xff]
    %v525 = vld [vmem:[%s5 + $0x60] sm:$0xff]
    %v526 = vld [vmem:[%s5 + $0x68] sm:$0xff]
    %v527 = vld [vmem:[%s5 + $0x70] sm:$0xff]
    %v528 = vld [vmem:[%s5 + $0x78] sm:$0xff]
    %v529 = vld [vmem:[%s5 + $0x80] sm:$0xff]
    %v530 = vld [vmem:[%s5 + $0x88] sm:$0xff]
    %v531 = vld [vmem:[%s5 + $0x90] sm:$0xff]
    %v532 = vld [vmem:[%s5 + $0x98] sm:$0xff]
    %v533 = vld [vmem:[%s5 + $0xa0] sm:$0xff]
    %v534 = vld [vmem:[%s5 + $0xa8] sm:$0xff]
    %v535 = vld [vmem:[%s5 + $0xb0] sm:$0xff]
    %v536 = vld [vmem:[%s5 + $0xb8] sm:$0xff]
    %v537 = vld [vmem:[%s5 + $0xc0] sm:$0xff]
    %v538 = vld [vmem:[%s5 + $0xc8] sm:$0xff]
    %v539 = vld [vmem:[%s5 + $0xd0] sm:$0xff]
    %v540 = vld [vmem:[%s5 + $0xd8] sm:$0xff]
    %v541 = vld [vmem:[%s5 + $0xe0] sm:$0xff]
    %v542 = vld [vmem:[%s5 + $0xe8] sm:$0xff]
    %v543 = vld [vmem:[%s5 + $0xf0] sm:$0xff]
    %v544 = vld [vmem:[%s5 + $0xf8] sm:$0xff]
    %v545 = vld [vmem:[%s6] sm:$0x1]
    %v547 = vlaneseq
    %v548 = vshrl.u32 %v547, 7
    %v549 = vsub.s32 0, %v548
    %v550 = vrot.slane %v545, %v549
    %552 = vmatprep.subr.mxu0 0.0
    %553 = vmatpush1.msra.mxu0 %v513
    %554 = vmatprep.subr.mxu0 0.0
    %555 = vmatpush1.msra.mxu0 %v514
    %556 = vmatprep.subr.mxu0 0.0
    %557 = vmatpush1.msra.mxu0 %v515
    %558 = vmatprep.subr.mxu0 0.0
    %559 = vmatpush1.msra.mxu0 %v516
    %560 = vmatprep.subr.mxu0 0.0
    %561 = vmatpush1.msra.mxu0 %v517
    %562 = vmatprep.subr.mxu0 0.0
    %563 = vmatpush1.msra.mxu0 %v518
    %564 = vmatprep.subr.mxu0 0.0
    %565 = vmatpush1.msra.mxu0 %v519
    %566 = vmatprep.subr.mxu0 0.0
    %567 = vmatpush1.msra.mxu0 %v520
    %568 = vmatprep.subr.mxu0 0.0
    %569 = vmatpush1.msra.mxu0 %v521
    %570 = vmatprep.subr.mxu0 0.0
    %571 = vmatpush1.msra.mxu0 %v522
    %572 = vmatprep.subr.mxu0 0.0
    %573 = vmatpush1.msra.mxu0 %v523
    %574 = vmatprep.subr.mxu0 0.0
    %575 = vmatpush1.msra.mxu0 %v524
    %576 = vmatprep.subr.mxu0 0.0
    %577 = vmatpush1.msra.mxu0 %v525
    %578 = vmatprep.subr.mxu0 0.0
    %579 = vmatpush1.msra.mxu0 %v526
    %580 = vmatprep.subr.mxu0 0.0
    %581 = vmatpush1.msra.mxu0 %v527
    %582 = vmatprep.subr.mxu0 0.0
    %583 = vmatpush1.msra.mxu0 %v528
    %584 = vmatprep.subr.mxu0 0.0
    %585 = vmatpush1.msra.mxu0 %v529
    %586 = vmatprep.subr.mxu0 0.0
    %587 = vmatpush1.msra.mxu0 %v530
    %588 = vmatprep.subr.mxu0 0.0
    %589 = vmatpush1.msra.mxu0 %v531
    %590 = vmatprep.subr.mxu0 0.0
    %591 = vmatpush1.msra.mxu0 %v532
    %592 = vmatprep.subr.mxu0 0.0
    %593 = vmatpush1.msra.mxu0 %v533
    %594 = vmatprep.subr.mxu0 0.0
    %595 = vmatpush1.msra.mxu0 %v534
    %596 = vmatprep.subr.mxu0 0.0
    %597 = vmatpush1.msra.mxu0 %v535
    %598 = vmatprep.subr.mxu0 0.0
    %599 = vmatpush1.msra.mxu0 %v536
    %600 = vmatprep.subr.mxu0 0.0
    %601 = vmatpush1.msra.mxu0 %v537
    %602 = vmatprep.subr.mxu0 0.0
    %603 = vmatpush1.msra.mxu0 %v538
    %604 = vmatprep.subr.mxu0 0.0
    %605 = vmatpush1.msra.mxu0 %v539
    %606 = vmatprep.subr.mxu0 0.0
    %607 = vmatpush1.msra.mxu0 %v540
    %608 = vmatprep.subr.mxu0 0.0
    %609 = vmatpush1.msra.mxu0 %v541
    %610 = vmatprep.subr.mxu0 0.0
    %611 = vmatpush1.msra.mxu0 %v542
    %612 = vmatprep.subr.mxu0 0.0
    %613 = vmatpush1.msra.mxu0 %v543
    %614 = vmatprep.subr.mxu0 0.0
    %615 = vmatpush1.msra.mxu0 %v544
    %616 = vmatprep.mubr.f32.mxu0 %v512
    %617 = vmatmul.mubr.f32.gmra.mrb[0].mxu0 %v511
    %v618 = vpop.f32.mrb[0].mxu0
    %v619 = vadd.f32 %v550, %v618
    %v620 = vpop.f32.mrb[0].mxu0
    %621 = vdwg.mxu0
    %vm622 = vcmask 523264
    %623 = vst.msk [vmem:[%s7] sm:$0xff] %vm622, %v619
    // Predicated region
    $region34: #{decoder_conv_forward.1} parent=1 // pred_check
      _
    $region35: #{decoder_conv_forward.1} parent=1 // pred_check_branch
      %625 = sbr.rel (0) target = $region37
    $region36: #{decoder_conv_forward.1} parent=1 // pred_region
      _
    $region37: #{decoder_conv_forward.1} parent=1 // pred_fallthru
      _
    // Predicated region
    $region38: #{decoder_conv_forward.1} parent=1 // pred_check
      _
    $region39: #{decoder_conv_forward.1} parent=1 // pred_check_branch
      %627 = sbr.rel (0) target = $region41
    $region40: #{decoder_conv_forward.1} parent=1 // pred_region
      _
    $region41: #{decoder_conv_forward.1} parent=1 // pred_fallthru
      _
    %628 = vsyncpa [#allocation3], 1

</llo_original>
